<compile_context>
chip_gen: v7x
topology: tpu7x:2x2x1
jax: 0.10.0
libtpu: 0.0.40
codegen_flags: <defaults>
</compile_context>

<pallas_src>
import jax
import jax.numpy as jnp
from jax.experimental import pallas as pl
from jax.experimental.pallas import tpu as pltpu

LANE = 128            # lane width of a vreg
MAX_TILE_R = 2048     # (2, 2048, 128) f32 = 2 MiB input block; x2 (out) x2 (dbl-buf) = 8 MiB VMEM
PALLAS_MIN_LANES = 1024  # below one fully packed VMEM tile, Pallas launch is pure overhead


def _chem_rhs_kernel(theta_ref, x_ref, out_ref):
    """Batched ODE right-hand side.

    theta_ref: SMEM f32[3]                 (shared rate constants)
    x_ref:     VMEM f32[2, TILE_R, 128]    ([0] = species A slab, [1] = species B slab)
    out_ref:   VMEM f32[2, TILE_R, 128]    ([0] = dA/dt,          [1] = dB/dt)
    """
    # Scalar loads from SMEM, hoisted once per grid step.
    th0 = theta_ref[0]
    th1 = theta_ref[1]
    th2 = theta_ref[2]

    x0 = x_ref[0]                         # (TILE_R, 128) dense slab
    x1 = x_ref[1]                         # (TILE_R, 128) dense slab

    coupling = th1 * x0 * (x1 * x1)       # theta[1] * x[0] * x[1]**2, reused
    out_ref[0] = th0 - coupling           # dA/dt  (full unmasked slab store)
    out_ref[1] = coupling - th2 * x1      # dB/dt  (full unmasked slab store)


def _rhs_jnp(theta, x):
    """Pure-jnp RHS (used for tiny batches / single sample)."""
    coupling = theta[1] * x[0] * x[1] ** 2
    return jnp.stack([theta[0] - coupling, coupling - theta[2] * x[1]], axis=0)


def _choose_tile_r(R):
    """Sublane tile: full extent when small, else >=2 grid steps, capped at MAX_TILE_R."""
    if R <= 8:
        return int(R)                     # single full-extent block (allowed: equals array dim)
    half = -(-R // 2)                     # ceil(R / 2) -> at least 2 grid steps
    tile = ((half + 7) // 8) * 8          # multiple of 8 sublanes
    return int(min(MAX_TILE_R, tile))


def chemical_reaction_simple_batched(theta, t, x, *, force_pallas=False):
    """Vectorized RHS for B independent states.

    theta: (3,) rate constants (shared across the batch)
    t:     unused (matches the PyTorch module)
    x:     (2, B) states, species first, batch last
    returns (2, B) float32 derivatives.
    """
    del t  # unused, matches the PyTorch module
    theta = jnp.asarray(theta, jnp.float32)
    x = jnp.asarray(x, jnp.float32)
    assert x.ndim == 2 and x.shape[0] == 2, "expected state of shape (2, B)"
    B = x.shape[1]

    # Tiny batches: a Pallas launch costs microseconds vs nanoseconds of math.
    if B < PALLAS_MIN_LANES and not force_pallas:
        return _rhs_jnp(theta, x)

    # Lane axis must be a multiple of 128; pad at most 127 lanes (negligible copy).
    Bp = pl.cdiv(B, LANE) * LANE
    if Bp != B:
        x = jnp.pad(x, ((0, 0), (0, Bp - B)))
    R = Bp // LANE
    x3 = x.reshape(2, R, LANE)            # sublane+lane dense species slabs

    tile_r = _choose_tile_r(R)
    grid = (pl.cdiv(R, tile_r),)

    out = pl.pallas_call(
        _chem_rhs_kernel,
        out_shape=jax.ShapeDtypeStruct((2, R, LANE), jnp.float32),
        grid=grid,
        in_specs=[
            # theta: tiny, shared, scalar-indexed -> SMEM, full array each step.
            pl.BlockSpec(memory_space=pltpu.MemorySpace.SMEM),
            # x: dense (2, tile_r, 128) VMEM blocks over the batch axis.
            pl.BlockSpec((2, tile_r, LANE), lambda i: (0, i, 0)),
        ],
        out_specs=pl.BlockSpec((2, tile_r, LANE), lambda i: (0, i, 0)),
        compiler_params=pltpu.CompilerParams(
            # batch axis is embarrassingly parallel -> v7x splits it over 2 TCs
            dimension_semantics=("parallel",),
        ),
    )(theta, x3)

    return out.reshape(2, Bp)[:, :B]


def chemical_reaction_simple(theta, t, x):
    """Exact equivalent of ChemicalReactionSimple(theta).forward(t, x).

    theta: (3,), x: (2,)  ->  (2,) float32.
    Single sample = ~6 FLOPs, so this deliberately does NOT launch a kernel.
    """
    del t
    theta = jnp.asarray(theta, jnp.float32)
    x = jnp.asarray(x, jnp.float32)
    return _rhs_jnp(theta, x).astype(jnp.float32)


if __name__ == "__main__":
    # Deterministic "parameters": theta from the module __init__ (3 rate constants).
    theta = jnp.array([0.5, 1.0, 3.0], dtype=jnp.float32)
    t = jnp.float32(0.0)

    key = jax.random.PRNGKey(0)
    k1, k2, k3 = jax.random.split(key, 3)

    # --- single-sample path (matches the PyTorch forward exactly) -----------
    x_single = jax.random.uniform(k1, (2,), dtype=jnp.float32, minval=0.1, maxval=2.0)
    out_single = jax.block_until_ready(chemical_reaction_simple(theta, t, x_single))
    coupling = theta[1] * x_single[0] * x_single[1] ** 2
    ref_single = jnp.array(
        [theta[0] - coupling, coupling - theta[2] * x_single[1]], jnp.float32
    )
    assert out_single.shape == (2,) and out_single.dtype == jnp.float32
    assert jnp.allclose(out_single, ref_single, rtol=1e-6, atol=1e-6)

    # --- batched Pallas path (dense (2, R, 128) layout, multi-step grid) -----
    B = 4096  # R = 32 sublane rows -> tile_r = 16, grid = 2 ("parallel")
    x_batch = jax.random.uniform(k2, (2, B), dtype=jnp.float32, minval=0.1, maxval=2.0)
    out_batch = jax.block_until_ready(
        chemical_reaction_simple_batched(theta, t, x_batch)
    )
    coupling_b = theta[1] * x_batch[0] * x_batch[1] ** 2
    ref_batch = jnp.stack(
        [theta[0] - coupling_b, coupling_b - theta[2] * x_batch[1]], axis=0
    ).astype(jnp.float32)
    assert out_batch.shape == (2, B) and out_batch.dtype == jnp.float32
    assert jnp.allclose(out_batch, ref_batch, rtol=1e-6, atol=1e-6)

    # --- small, misaligned batch forced through Pallas (pad + full-extent block)
    B2 = 250  # Bp = 256, R = 2 -> single full-extent (2, 2, 128) block
    x_small = jax.random.uniform(k3, (2, B2), dtype=jnp.float32, minval=0.1, maxval=2.0)
    out_small = jax.block_until_ready(
        chemical_reaction_simple_batched(theta, t, x_small, force_pallas=True)
    )
    coupling_s = theta[1] * x_small[0] * x_small[1] ** 2
    ref_small = jnp.stack(
        [theta[0] - coupling_s, coupling_s - theta[2] * x_small[1]], axis=0
    ).astype(jnp.float32)
    assert out_small.shape == (2, B2) and out_small.dtype == jnp.float32
    assert jnp.allclose(out_small, ref_small, rtol=1e-6, atol=1e-6)

    print("KERNEL_OK")
</pallas_src>

<mosaic_0001>
module attributes {stable_mosaic.version = 11 : i64} {
  func.func @_chem_rhs_kernel(%arg0: i32, %arg1: memref<3xf32, #tpu.memory_space<smem>>, %arg2: memref<2x16x128xf32, #tpu.memory_space<vmem>>, %arg3: memref<2x16x128xf32, #tpu.memory_space<vmem>>) attributes {dimension_semantics = [#tpu.dimension_semantics<parallel>], iteration_bounds = array<i64: 2>, scalar_prefetch = 0 : i64, scratch_operands = 0 : i64, tpu.core_type = #tpu.core_type<tc>, window_params = [{transform_indices = @transform_0, window_bounds = array<i64: 3>}, {transform_indices = @transform_1, window_bounds = array<i64: 2, 16, 128>}, {transform_indices = @transform_2, window_bounds = array<i64: 2, 16, 128>}]} {
    %c0 = arith.constant 0 : index
    %0 = memref.load %arg1[%c0] : memref<3xf32, #tpu.memory_space<smem>>
    %c1 = arith.constant 1 : index
    %1 = memref.load %arg1[%c1] : memref<3xf32, #tpu.memory_space<smem>>
    %c2 = arith.constant 2 : index
    %2 = memref.load %arg1[%c2] : memref<3xf32, #tpu.memory_space<smem>>
    %c0_0 = arith.constant 0 : index
    %c0_1 = arith.constant 0 : index
    %c0_2 = arith.constant 0 : index
    %3 = vector.load %arg2[%c0_0, %c0_1, %c0_2] : memref<2x16x128xf32, #tpu.memory_space<vmem>>, vector<1x16x128xf32>
    %4 = vector.shape_cast %3 : vector<1x16x128xf32> to vector<16x128xf32>
    %c1_3 = arith.constant 1 : index
    %c0_4 = arith.constant 0 : index
    %c0_5 = arith.constant 0 : index
    %5 = vector.load %arg2[%c1_3, %c0_4, %c0_5] : memref<2x16x128xf32, #tpu.memory_space<vmem>>, vector<1x16x128xf32>
    %6 = vector.shape_cast %5 : vector<1x16x128xf32> to vector<16x128xf32>
    %7 = vector.broadcast %1 : f32 to vector<16x128xf32>
    %8 = arith.mulf %7, %4 : vector<16x128xf32>
    %9 = arith.mulf %6, %6 : vector<16x128xf32>
    %10 = arith.mulf %8, %9 : vector<16x128xf32>
    %11 = vector.broadcast %0 : f32 to vector<16x128xf32>
    %12 = arith.subf %11, %10 : vector<16x128xf32>
    %c0_6 = arith.constant 0 : index
    %c0_7 = arith.constant 0 : index
    %c0_8 = arith.constant 0 : index
    %13 = vector.load %arg3[%c0_6, %c0_7, %c0_8] : memref<2x16x128xf32, #tpu.memory_space<vmem>>, vector<1x16x128xf32>
    %14 = vector.shape_cast %13 : vector<1x16x128xf32> to vector<16x128xf32>
    %15 = vector.shape_cast %12 : vector<16x128xf32> to vector<1x16x128xf32>
    tpu.vector_store %arg3[%c0_6, %c0_7, %c0_8], %15 {strides = array<i32>} : memref<2x16x128xf32, #tpu.memory_space<vmem>>, vector<1x16x128xf32>,
    %16 = vector.broadcast %2 : f32 to vector<16x128xf32>
    %17 = arith.mulf %16, %6 : vector<16x128xf32>
    %18 = arith.subf %10, %17 : vector<16x128xf32>
    %c1_9 = arith.constant 1 : index
    %c0_10 = arith.constant 0 : index
    %c0_11 = arith.constant 0 : index
    %19 = vector.load %arg3[%c1_9, %c0_10, %c0_11] : memref<2x16x128xf32, #tpu.memory_space<vmem>>, vector<1x16x128xf32>
    %20 = vector.shape_cast %19 : vector<1x16x128xf32> to vector<16x128xf32>
    %21 = vector.shape_cast %18 : vector<16x128xf32> to vector<1x16x128xf32>
    tpu.vector_store %arg3[%c1_9, %c0_10, %c0_11], %21 {strides = array<i32>} : memref<2x16x128xf32, #tpu.memory_space<vmem>>, vector<1x16x128xf32>,
    return
  }
  func.func @transform_0(%arg0: i32) -> i32 {
    %c0_i32 = arith.constant 0 : i32
    %c0_i32_0 = arith.constant 0 : i32
    return %c0_i32 : i32
  }
  func.func @transform_1(%arg0: i32) -> (i32, i32, i32) {
    %c0_i32 = arith.constant 0 : i32
    %c0_i32_0 = arith.constant 0 : i32
    %c0_i32_1 = arith.constant 0 : i32
    return %c0_i32, %arg0, %c0_i32_0 : i32, i32, i32
  }
  func.func @transform_2(%arg0: i32) -> (i32, i32, i32) {
    %c0_i32 = arith.constant 0 : i32
    %c0_i32_0 = arith.constant 0 : i32
    %c0_i32_1 = arith.constant 0 : i32
    return %c0_i32, %arg0, %c0_i32_0 : i32, i32, i32
  }
}

</mosaic_0001>

<llo_original>
// kernel: tpu_custom_call.1
$region0: #{tpu_custom_call.1}
  #allocation0 [shape = 'u32[]', space=smem, size = 0x4, offset = 0x4, fixed_abs, tag = 'smem constant byte address 0x4 - core index']
  #allocation1 [shape = 'u32[144,128]{1,0:T(1,128)}', space=vmem, size = 0x12000, scoped, tag = 'internal scratch']
  #allocation8 [shape = 's32[]', space=sflag, size = 0x4, offset = 0, fixed_abs, tag = 'sflag constant byte address 0x0 - dummy sync flag']
  #allocation10 [shape = 's32[]', space=sflag, size = 0x4, offset = 0, fixed_abs, tag = 'sflag constant byte address 0x0 - dummy sync flag']
  %s0 = inlined_call_operand.hbm [shape: f32[3], index: 0, kind: input, shape index: {}]
  %s1 = inlined_call_operand.hbm [shape: f32[2,32,128], index: 1, kind: input, shape index: {}]
  %s2 = inlined_call_operand.hbm [shape: f32[2,32,128], index: 2, kind: output, shape index: {}]
  %s3 = sld [smem:[#allocation0]]
  $region49: #{tpu_custom_call.1} parent=0
    _
  %s5 = ssub.s32 1, %s3
  %s6 = scalar_select 0, %s5, %s3
  $region1: #{tpu_custom_call.1} parent=0
    #allocation2 [shape = 'u8[512]{0}', space=smem, size = 0x200, scoped, tag = 'input window, operand 0, single buffered']
    #allocation3 [shape = 's32[2]{0}', space=sflag, size = 0x8, scoped, tag = 'scoped memory for tpu_custom_call.1']
    #allocation4 [shape = 's32[2]{0}', space=sflag, size = 0x8, scoped, tag = 'scoped memory for tpu_custom_call.1']
    #allocation5 [shape = 's32[2]{0}', space=sflag, size = 0x8, scoped, tag = 'scoped memory for tpu_custom_call.1']
    #allocation6 [shape = 'u8[32768]{0}', space=vmem, size = 0x8000, scoped, tag = 'input window, operand 1']
    #allocation7 [shape = 'u8[32768]{0}', space=vmem, size = 0x8000, scoped, tag = 'output window, operand 0']
    %7 = vsyncpa [#allocation5], 0
    %8 = vsyncpa [#allocation3], 0
    %s9 = scalar_lea.sflag [#allocation3], 1
    %10 = vsyncpa %s9, 0
    %11 = vsyncpa [#allocation4], 0
    %s12 = scalar_lea.sflag [#allocation4], 1
    %13 = vsyncpa %s12, 0
    loop: start=0, step=1, limit=4
    $region2: #{tpu_custom_call.1} parent=1 // loop_pre_header
      _
    $region3: #{tpu_custom_call.1} parent=1 // loop_header
      %s15 = sphi 0, %s19
      %p16 = scmp.ge.s32.totalorder %s15, 4
      %s23 = sphi 0, %s23
      %s25 = sphi 0, %s23
      %s26 = sphi 0, %s25
      %s40 = sphi 0, %s26
      %s46 = sphi 0, %s48
      %s49 = sphi 0, %s46
      %s50 = sphi 0, %s49
      %s66 = sphi 0, %s50
      %s72 = sphi 0, %s74
      %s75 = sphi 0, %s72
      %s76 = sphi 0, %s75
      %s92 = sphi 0, %s76
    $region4: #{tpu_custom_call.1} parent=1 // loop_header_branch
      %18 = sbr.rel (%p16) target = $region8
    $region5: #{tpu_custom_call.1} parent=1 // loop_body
      %s20 = ssub.s32 %s15, 1
      %s21 = ssub.s32 %s15, 2
      %s22 = sadd.s32 %s15, 1
      %s24 = sadd.s32 %s23, 1
      %p27 = scmp.eq.s32.totalorder %s15, 1
      %p28 = scmp.ne.s32.totalorder %s23, %s25
      %p29 = scmp.eq.s32.totalorder %s15, 0
      %p30 = por %p28, %p29
      %p31 = scmp.ne.s32.totalorder %s23, %s25
      %p32 = scmp.eq.s32.totalorder %s20, 1
      %p33 = por %p31, %p32
      %p34 = scmp.ne.s32.totalorder %s25, %s26
      %p35 = scmp.eq.s32.totalorder %s20, 0
      %p36 = por %p34, %p35
      %p37 = scmp.ne.s32.totalorder %s25, %s26
      %p38 = scmp.eq.s32.totalorder %s21, 1
      %p39 = por %p37, %p38
      %p41 = scmp.ne.s32.totalorder %s26, %s40
      %p42 = scmp.eq.s32.totalorder %s21, 0
      %p43 = por %p41, %p42
      %s44 = ssub.s32 %s15, %s22
      %p45 = scmp.eq.s32.totalorder %s44, 0
      %s47 = sadd.s32 %s46, 1
      %s48 = scalar_select %p45, %s46, %s47
      %p51 = pneg %p45
      %p52 = scmp.eq.s32.totalorder %s15, 1
      %p53 = por %p51, %p52
      %p54 = scmp.ne.s32.totalorder %s46, %s49
      %p55 = scmp.eq.s32.totalorder %s15, 0
      %p56 = por %p54, %p55
      %p57 = scmp.ne.s32.totalorder %s46, %s49
      %p58 = scmp.eq.s32.totalorder %s20, 1
      %p59 = por %p57, %p58
      %p60 = scmp.ne.s32.totalorder %s49, %s50
      %p61 = scmp.eq.s32.totalorder %s20, 0
      %p62 = por %p60, %p61
      %p63 = scmp.ne.s32.totalorder %s49, %s50
      %p64 = scmp.eq.s32.totalorder %s21, 1
      %p65 = por %p63, %p64
      %p67 = scmp.ne.s32.totalorder %s50, %s66
      %p68 = scmp.eq.s32.totalorder %s21, 0
      %p69 = por %p67, %p68
      %s70 = ssub.s32 %s15, %s22
      %p71 = scmp.eq.s32.totalorder %s70, 0
      %s73 = sadd.s32 %s72, 1
      %s74 = scalar_select %p71, %s72, %s73
      %p77 = pneg %p71
      %p78 = scmp.eq.s32.totalorder %s15, 1
      %p79 = por %p77, %p78
      %p80 = scmp.ne.s32.totalorder %s72, %s75
      %p81 = scmp.eq.s32.totalorder %s15, 0
      %p82 = por %p80, %p81
      %p83 = scmp.ne.s32.totalorder %s72, %s75
      %p84 = scmp.eq.s32.totalorder %s20, 1
      %p85 = por %p83, %p84
      %p86 = scmp.ne.s32.totalorder %s75, %s76
      %p87 = scmp.eq.s32.totalorder %s20, 0
      %p88 = por %p86, %p87
      %p89 = scmp.ne.s32.totalorder %s75, %s76
      %p90 = scmp.eq.s32.totalorder %s21, 1
      %p91 = por %p89, %p90
      %p93 = scmp.ne.s32.totalorder %s76, %s92
      %p94 = scmp.eq.s32.totalorder %s21, 0
      %p95 = por %p93, %p94
      %p96 = scmp.le.s32.totalorder 1, %s15
      %p97 = scmp.lt.s32.totalorder %s15, 3
      %p98 = pnand %p96, %p97
      %p99 = pneg %p98
      // Predicated region
      $region9: #{tpu_custom_call.1} parent=5 // pred_check
        _
      $region10: #{tpu_custom_call.1} parent=5 // pred_check_branch
        %101 = sbr.rel (%p98) target = $region12
      $region11: #{tpu_custom_call.1} parent=5 // pred_region
        %s102 = ssub.s32 %s15, 1
        // Predicated region
        $region13: #{tpu_custom_call.1} parent=11 // pred_check
          %p103 = pneg %p36
        $region14: #{tpu_custom_call.1} parent=11 // pred_check_branch
          %105 = sbr.rel (%p103) target = $region16
        $region15: #{tpu_custom_call.1} parent=11 // pred_region
          %s107 = ssub.s32 16, 16
          %108 = vsyncadd [#allocation5], %s107
          %111 = dma.hbm_to_smem %s0, 16, [#allocation2], [#allocation5]
        $region16: #{tpu_custom_call.1} parent=11 // pred_fallthru
          _
      $region12: #{tpu_custom_call.1} parent=5 // pred_fallthru
        _
      %p112 = scmp.lt.s32.totalorder %s15, 2
      // Predicated region
      $region17: #{tpu_custom_call.1} parent=5 // pred_check
        %p113 = pneg %p112
      $region18: #{tpu_custom_call.1} parent=5 // pred_check_branch
        %115 = sbr.rel (%p113) target = $region20
      $region19: #{tpu_custom_call.1} parent=5 // pred_region
        // Predicated region
        $region21: #{tpu_custom_call.1} parent=19 // pred_check
          %p116 = pneg %p56
        $region22: #{tpu_custom_call.1} parent=19 // pred_check_branch
          %118 = sbr.rel (%p116) target = $region24
        $region23: #{tpu_custom_call.1} parent=19 // pred_region
          #allocation9 [shape = 'u32[6]{0}', space=smem, size = 0x18, scoped, tag = 'DMA stride descriptor']
          %s119 = sand.u32 %s46, 1
          %s120 = scalar_lea.sflag [#allocation3], %s119
          %s121 = sand.u32 %s46, 1
          %s122 = smul.addr %s121, 32
          %s123 = scalar_lea.vmem [#allocation6], %s122
          %s124 = smul.u32 2, %s15
          %s126 = ssub.s32 512, 512
          %127 = vsyncadd %s120, %s126
          %s128 = smul.addr %s124, 128
          %s129 = scalar_lea.hbm %s1, %s128
          %s131 = sshll.u32 1, 14
          %s132 = sxor.u32 4294967295, %s131
          %s134 = sld [smem:[#allocation0]]
          %s135 = sadd.s32 2, %s134
          %s137 = sshll.u32 7, 26
          %s138 = sxor.u32 4294967295, %s137
          %s139 = sand.u32 0, %s138
          %s140 = sshll.u32 %s135, 26
          %s141 = sor.u32 %s139, %s140
          %s142 = sshll.u32 %s123, 4
          %s143 = int_to_ptr.vmem [resolvable:$true] %s142
          %149 = sst [smem:[#allocation9]] 512
          %s150 = scalar_lea.smem [#allocation9], 1
          %151 = sst [smem:[%s150]] 256
          %s152 = scalar_lea.smem [#allocation9], 2
          %153 = sst [smem:[%s152]] 2
          %s154 = scalar_lea.smem [#allocation9], 3
          %155 = sst [smem:[%s154]] 128
          %s156 = scalar_lea.smem [#allocation9], 4
          %157 = sst [smem:[%s156]] 128
          %s158 = scalar_lea.smem [#allocation9], 5
          %159 = sst [smem:[%s158]] 8
          %161 = dma.general %s129, 512, %s143, %s120, [#allocation8], [#allocation9], %s141, 0
        $region24: #{tpu_custom_call.1} parent=19 // pred_fallthru
          _
      $region20: #{tpu_custom_call.1} parent=5 // pred_fallthru
        _
      %p162 = scmp.le.s32.totalorder 1, %s15
      %p163 = scmp.lt.s32.totalorder %s15, 3
      %p164 = pnand %p162, %p163
      %p165 = pneg %p164
      // Predicated region
      $region25: #{tpu_custom_call.1} parent=5 // pred_check
        _
      $region26: #{tpu_custom_call.1} parent=5 // pred_check_branch
        %167 = sbr.rel (%p164) target = $region28
      $region27: #{tpu_custom_call.1} parent=5 // pred_region
        %s168 = ssub.s32 %s15, 1
        // Predicated region
        $region29: #{tpu_custom_call.1} parent=27 // pred_check
          %p169 = pneg %p36
        $region30: #{tpu_custom_call.1} parent=27 // pred_check_branch
          %171 = sbr.rel (%p169) target = $region32
        $region31: #{tpu_custom_call.1} parent=27 // pred_region
          %172 = dma.done [#allocation5], 16
        $region32: #{tpu_custom_call.1} parent=27 // pred_fallthru
          _
        %s173 = sand.u32 %s49, 1
        %s174 = scalar_lea.sflag [#allocation3], %s173
        %s175 = sand.u32 %s49, 1
        %s176 = smul.addr %s175, 32
        %s177 = scalar_lea.vmem [#allocation6], %s176
        // Predicated region
        $region33: #{tpu_custom_call.1} parent=27 // pred_check
          %p178 = pneg %p62
        $region34: #{tpu_custom_call.1} parent=27 // pred_check_branch
          %180 = sbr.rel (%p178) target = $region36
        $region35: #{tpu_custom_call.1} parent=27 // pred_region
          %181 = dma.done %s174, 512
        $region36: #{tpu_custom_call.1} parent=27 // pred_fallthru
          _
        %182 = sfence
        %p183 = pneg %p36
        %p184 = pneg %p33
        %s185 = sand.u32 %s49, 1
        %s186 = scalar_lea.sflag [#allocation3], %s185
        %s187 = sand.u32 %s49, 1
        %s188 = smul.addr %s187, 32
        %s189 = scalar_lea.vmem [#allocation6], %s188
        %p190 = pneg %p62
        %p191 = pneg %p59
        %p192 = pneg %p88
        %p193 = pneg %p85
        %s194 = sand.u32 %s75, 1
        %s195 = scalar_lea.sflag [#allocation4], %s194
        %s196 = sand.u32 %s75, 1
        %s197 = smul.addr %s196, 32
        %s198 = scalar_lea.vmem [#allocation7], %s197
        %s199 = smul.u32 2, %s20
        %s200 = smul.u32 2, %s20
        %s201 = sld [smem:[#allocation2]]
        %s202 = sld [smem:[#allocation2 + $0x1]]
        %s203 = sld [smem:[#allocation2 + $0x2]]
        %v204 = vld [vmem:[%s177] sm:$0xff]
        %v205 = vld [vmem:[%s177 + $0x8] sm:$0xff]
        %s206 = scalar_lea.vmem %s177, 16 [#allocation6]
        %v207 = vld [vmem:[%s206] sm:$0xff]
        %v208 = vld [vmem:[%s206 + $0x8] sm:$0xff]
        %v209 = vstv %s202
        %v210 = vmul.f32 %v209, %v204
        %v211 = vmul.f32 %v209, %v205
        %v212 = vmul.f32 %v207, %v207
        %v213 = vmul.f32 %v208, %v208
        %v214 = vmul.f32 %v210, %v212
        %v215 = vmul.f32 %v211, %v213
        %v216 = vstv %s201
        %v217 = vsub.f32 %v216, %v214
        %v218 = vsub.f32 %v216, %v215
        %219 = vst [vmem:[%s198] sm:$0xff] %v217
        %220 = vst [vmem:[%s198 + $0x8] sm:$0xff] %v218
        %v221 = vstv %s203
        %v222 = vmul.f32 %v221, %v207
        %v223 = vmul.f32 %v221, %v208
        %v224 = vsub.f32 %v214, %v222
        %v225 = vsub.f32 %v215, %v223
        %s226 = scalar_lea.vmem %s198, 16 [#allocation7]
        %227 = vst [vmem:[%s226] sm:$0xff] %v224
        %228 = vst [vmem:[%s226 + $0x8] sm:$0xff] %v225
        %s229 = sand.u32 %s75, 1
        %s230 = scalar_lea.sflag [#allocation4], %s229
        %s231 = sand.u32 %s75, 1
        %s232 = smul.addr %s231, 32
        %s233 = scalar_lea.vmem [#allocation7], %s232
        // Predicated region
        $region37: #{tpu_custom_call.1} parent=27 // pred_check
          %p234 = pneg %p85
        $region38: #{tpu_custom_call.1} parent=27 // pred_check_branch
          %236 = sbr.rel (%p234) target = $region40
        $region39: #{tpu_custom_call.1} parent=27 // pred_region
          #allocation11 [shape = 'u32[6]{0}', space=smem, size = 0x18, scoped, tag = 'DMA stride descriptor']
          %s237 = smul.u32 2, %s20
          %s239 = ssub.s32 512, 512
          %240 = vsyncadd %s230, %s239
          %s241 = smul.addr %s237, 128
          %s242 = scalar_lea.hbm %s2, %s241
          %s244 = sshll.u32 1, 14
          %s245 = sxor.u32 4294967295, %s244
          %s248 = sshll.u32 7, 18
          %s249 = sxor.u32 4294967295, %s248
          %s250 = sand.u32 0, %s249
          %s252 = sor.u32 %s250, 0
          %s254 = sshll.u32 3, 24
          %s255 = sxor.u32 4294967295, %s254
          %s256 = sand.u32 %s252, %s255
          %s258 = sor.u32 %s256, 0
          %s259 = sshll.u32 %s233, 4
          %s260 = int_to_ptr.vmem [resolvable:$true] %s259
          %266 = sst [smem:[#allocation11]] 256
          %s267 = scalar_lea.smem [#allocation11], 1
          %268 = sst [smem:[%s267]] 512
          %s269 = scalar_lea.smem [#allocation11], 2
          %270 = sst [smem:[%s269]] 2
          %s271 = scalar_lea.smem [#allocation11], 3
          %272 = sst [smem:[%s271]] 128
          %s273 = scalar_lea.smem [#allocation11], 4
          %274 = sst [smem:[%s273]] 128
          %s275 = scalar_lea.smem [#allocation11], 5
          %276 = sst [smem:[%s275]] 8
          %278 = dma.general %s260, 512, %s242, %s230, [#allocation10], [#allocation11], %s258, 0
        $region40: #{tpu_custom_call.1} parent=27 // pred_fallthru
          _
      $region28: #{tpu_custom_call.1} parent=5 // pred_fallthru
        _
      %p279 = scmp.le.s32.totalorder 2, %s15
      // Predicated region
      $region41: #{tpu_custom_call.1} parent=5 // pred_check
        %p280 = pneg %p279
      $region42: #{tpu_custom_call.1} parent=5 // pred_check_branch
        %282 = sbr.rel (%p280) target = $region44
      $region43: #{tpu_custom_call.1} parent=5 // pred_region
        %s283 = ssub.s32 %s15, 2
        // Predicated region
        $region45: #{tpu_custom_call.1} parent=43 // pred_check
          %p284 = pneg %p91
        $region46: #{tpu_custom_call.1} parent=43 // pred_check_branch
          %286 = sbr.rel (%p284) target = $region48
        $region47: #{tpu_custom_call.1} parent=43 // pred_region
          %s287 = sand.u32 %s76, 1
          %s288 = scalar_lea.sflag [#allocation4], %s287
          %s289 = sand.u32 %s76, 1
          %s290 = smul.addr %s289, 32
          %s291 = scalar_lea.vmem [#allocation7], %s290
          %292 = dma.done %s288, 512
        $region48: #{tpu_custom_call.1} parent=43 // pred_fallthru
          _
      $region44: #{tpu_custom_call.1} parent=5 // pred_fallthru
        _
    $region6: #{tpu_custom_call.1} parent=1 // loop_footer
      %s19 = sadd.s32 1, %s15
    $region7: #{tpu_custom_call.1} parent=1 // loop_footer_branch
      %14 = sbr.rel target = $region3
    $region8: #{tpu_custom_call.1} parent=1 // loop_exit
      _
    %293 = vsyncpa [#allocation3], 1
    %s294 = scalar_lea.sflag [#allocation3], 1
    %295 = vsyncpa %s294, 1
    %296 = vsyncpa [#allocation4], 1
    %s297 = scalar_lea.sflag [#allocation4], 1
    %298 = vsyncpa %s297, 1
    %299 = vsyncpa [#allocation5], 1
    %s300 = scalar_lea.sflag [#allocation5], 1
    %301 = vsyncpa %s300, 1

</llo_original>
